<compile_context>
chip_gen: v7x
topology: tpu7x:2x2x1
jax: 0.10.0
libtpu: 0.0.40
codegen_flags: <defaults>
</compile_context>

<pallas_src>
import jax
import jax.numpy as jnp
from jax.experimental import pallas as pl
from jax.experimental.pallas import tpu as pltpu

EPS = 1e-5  # nn.BatchNorm2d default eps


def _vmem_limit_bytes():
    """Generation-aware scoped-VMEM budget: ~50% of physical VMEM per core."""
    cap = 64 * 1024 * 1024  # conservative fallback (v7x per-TC VMEM)
    try:
        cap = int(pltpu.get_tpu_info().vmem_capacity_bytes)
    except Exception:
        pass
    # 64 MiB on v5e/v6e (128 MiB VMEM), 32 MiB on v7x (64 MiB VMEM).
    return min(cap // 2, 96 * 1024 * 1024)


def _pick_tile_hw(hw, n, cin, cout, tile_budget_bytes):
    """Largest legal tile (HW itself or a 128-multiple divisor of HW) that fits VMEM.

    Per-step working-set estimate (f32): double-buffered x and out blocks plus
    one set of in-kernel temporaries of the same footprint.
    """
    bytes_per_lane = 4 * (3 * cin + 3 * cout)
    max_tile = max(tile_budget_bytes // bytes_per_lane, 128)

    cands = []
    t = 128
    limit = min(hw - 1, max_tile)
    while t <= limit:
        if hw % t == 0:
            cands.append(t)  # lane-aligned exact divisor -> unmasked stores
        t += 128
    if hw <= max_tile or not cands:
        cands.append(hw)  # full-extent block is always legal

    tile = max(cands)

    # v7x has 2 TensorCores; make sure the fully-parallel grid has >= 2 steps
    # when the image can be split, so small-batch cases use both cores.
    if n * (hw // tile) < 2:
        smaller = [c for c in cands if c < tile]
        if smaller:
            tile = max(smaller)
    return tile


def _stats_kernel(x_ref, stats_ref):
    """Per-(image, tile) partial second-moment stats of x (no W, no bias, no y).

    x_ref:     (Cin, tile_hw)   spatial axis on lanes (lane-dense)
    stats_ref: (Cin, Cin + 1)   columns [0:Cin] = sum_p x x^T (Gram), column [Cin] = sum_p x
    """
    x = x_ref[...]
    cin = x.shape[0]
    # Gram rows via VPU broadcast-multiply + lane reduction.  Cin is tiny and
    # static, and this avoids any MXU rhs-transpose/relayout of the long HW axis.
    for c in range(cin):
        stats_ref[:, c:c + 1] = jnp.sum(x * x[c:c + 1, :], axis=1, keepdims=True)
    stats_ref[:, cin:cin + 1] = jnp.sum(x, axis=1, keepdims=True)


def _conv_bn_relu_kernel(x_ref, w_ref, scale_ref, shift_ref, o_ref):
    """y = W @ x, then folded BatchNorm affine + ReLU (lane-dense output)."""
    # TODO(synk): if profiling ever shows an MXU relayout / exposed MRF latency
    # for this K=Cin dot, switch to a VPU broadcast-MAC over the Cin rows.
    y = jnp.dot(w_ref[...], x_ref[...], preferred_element_type=jnp.float32)
    o_ref[...] = jnp.maximum(y * scale_ref[...] + shift_ref[...], 0.0).astype(o_ref.dtype)


def linear_layer(x_nchw, w, b, gamma, beta):
    N, Cin, H, W = x_nchw.shape
    Cout = w.shape[0]
    HW = H * W

    vmem_limit = _vmem_limit_bytes()
    tile_hw = _pick_tile_hw(HW, N, Cin, Cout, int(vmem_limit * 0.8))
    n_tiles = HW // tile_hw  # exact by construction
    grid = (N, n_tiles)

    # NCHW is already channel-major per image -> (N, Cin, HW) with zero data movement.
    x3d = x_nchw.reshape(N, Cin, HW).astype(jnp.float32)
    w2d = w.reshape(Cout, Cin).astype(jnp.float32)
    gamma2d = gamma.reshape(Cout, 1).astype(jnp.float32)
    beta2d = beta.reshape(Cout, 1).astype(jnp.float32)
    # The conv bias shifts y and the BN batch mean identically, so it cancels out
    # of the train-mode forward pass; accepted for API parity, never used.
    del b

    compiler_params = pltpu.CompilerParams(
        dimension_semantics=("parallel", "parallel"),
        vmem_limit_bytes=vmem_limit,
    )

    # Pass 1: per-(image, tile) partial stats of x (pure streaming; y never exists).
    stats = pl.pallas_call(
        _stats_kernel,
        out_shape=jax.ShapeDtypeStruct((N, n_tiles, Cin, Cin + 1), jnp.float32),
        grid_spec=pltpu.PrefetchScalarGridSpec(
            num_scalar_prefetch=0,
            grid=grid,
            in_specs=[pl.BlockSpec((None, Cin, tile_hw), lambda n, t: (n, 0, t))],
            out_specs=pl.BlockSpec((None, None, Cin, Cin + 1), lambda n, t: (n, t, 0, 0)),
        ),
        compiler_params=compiler_params,
    )(x3d)

    # Fold BatchNorm (training-mode batch stats, biased variance) into one
    # per-channel scale/shift -- tiny math, computed once on (Cin/Cout)-sized tensors.
    totals = jnp.sum(stats, axis=(0, 1))            # (Cin, Cin+1)
    gram = totals[:, :Cin]                           # sum_p x x^T
    sum_x = totals[:, Cin:]                          # (Cin, 1)
    m = jnp.float32(N * HW)
    mean_x = sum_x / m                               # (Cin, 1)
    cov_x = gram / m - mean_x @ mean_x.T             # (Cin, Cin)
    mean_wx = w2d @ mean_x                           # (Cout, 1) batch mean of W@x
    var_y = jnp.einsum("oc,cd,od->o", w2d, cov_x, w2d)[:, None]   # diag(W Cov W^T)
    # Single-pass variance can go slightly negative from cancellation; clamp.
    var_y = jnp.maximum(var_y, 0.0)
    inv = jax.lax.rsqrt(var_y + EPS)
    scale = gamma2d * inv                            # gamma / sqrt(var + eps)
    shift = beta2d - mean_wx * scale                 # conv bias cancels analytically

    # Pass 2: recompute the cheap K=Cin matmul, apply folded affine + ReLU.
    out3d = pl.pallas_call(
        _conv_bn_relu_kernel,
        out_shape=jax.ShapeDtypeStruct((N, Cout, HW), jnp.float32),
        grid_spec=pltpu.PrefetchScalarGridSpec(
            num_scalar_prefetch=0,
            grid=grid,
            in_specs=[
                pl.BlockSpec((None, Cin, tile_hw), lambda n, t: (n, 0, t)),
                pl.BlockSpec((Cout, Cin), lambda n, t: (0, 0)),
                pl.BlockSpec((Cout, 1), lambda n, t: (0, 0)),
                pl.BlockSpec((Cout, 1), lambda n, t: (0, 0)),
            ],
            out_specs=pl.BlockSpec((None, Cout, tile_hw), lambda n, t: (n, 0, t)),
        ),
        compiler_params=compiler_params,
    )(x3d, w2d, scale, shift)

    # (N, Cout, HW) -> NCHW is a pure reshape, no transpose needed.
    return out3d.reshape(N, Cout, H, W)


def reference(x_nchw, w, b, gamma, beta):
    """Plain-JAX reference of Conv2d(1x1) -> BatchNorm2d (train mode) -> ReLU."""
    y = jnp.einsum("nchw,oc->nohw", x_nchw, w.reshape(w.shape[0], w.shape[1])) + b[None, :, None, None]
    mean = jnp.mean(y, axis=(0, 2, 3), keepdims=True)
    var = jnp.mean((y - mean) ** 2, axis=(0, 2, 3), keepdims=True)  # biased var
    yhat = (y - mean) * jax.lax.rsqrt(var + EPS)
    yhat = yhat * gamma[None, :, None, None] + beta[None, :, None, None]
    return jnp.maximum(yhat, 0.0)


if __name__ == "__main__":
    key = jax.random.PRNGKey(0)
    kx, kw, kb = jax.random.split(key, 3)

    N, Cin, H, W = 2, 4, 16, 16
    Cout = 8

    x = jax.random.normal(kx, (N, Cin, H, W), dtype=jnp.float32)
    w = jax.random.normal(kw, (Cout, Cin, 1, 1), dtype=jnp.float32) * 0.1  # conv weight
    b = jax.random.normal(kb, (Cout,), dtype=jnp.float32) * 0.1            # conv bias
    gamma = jnp.ones((Cout,), dtype=jnp.float32)   # BatchNorm2d default init
    beta = jnp.zeros((Cout,), dtype=jnp.float32)

    out = linear_layer(x, w, b, gamma, beta)
    out = jax.block_until_ready(out)

    ref = reference(x, w, b, gamma, beta)
    assert out.shape == (N, Cout, H, W)
    assert jnp.allclose(out, ref, atol=1e-4, rtol=1e-4), "mismatch vs reference"

    print("KERNEL_OK")
</pallas_src>

<mosaic_0001>
module attributes {stable_mosaic.version = 11 : i64} {
  func.func @_stats_kernel(%arg0: i32, %arg1: i32, %arg2: memref<1x4x256xf32, #tpu.memory_space<vmem>>, %arg3: memref<1x1x4x5xf32, #tpu.memory_space<vmem>>) attributes {dimension_semantics = [#tpu.dimension_semantics<parallel>, #tpu.dimension_semantics<parallel>], iteration_bounds = array<i64: 2, 1>, scalar_prefetch = 0 : i64, scratch_operands = 0 : i64, tpu.core_type = #tpu.core_type<tc>, window_params = [{transform_indices = @transform_0, window_bounds = array<i64: 1, 4, 256>}, {transform_indices = @transform_1, window_bounds = array<i64: 1, 1, 4, 5>}]} {
    %c0 = arith.constant 0 : index
    %c0_0 = arith.constant 0 : index
    %c0_1 = arith.constant 0 : index
    %0 = vector.load %arg2[%c0, %c0_0, %c0_1] : memref<1x4x256xf32, #tpu.memory_space<vmem>>, vector<1x4x256xf32>
    %1 = vector.shape_cast %0 : vector<1x4x256xf32> to vector<4x256xf32>
    %2 = vector.extract_strided_slice %1 {offsets = [0, 0], sizes = [1, 256], strides = [1, 1]} : vector<4x256xf32> to vector<1x256xf32>
    %3 = vector.broadcast %2 : vector<1x256xf32> to vector<4x256xf32>
    %4 = arith.mulf %1, %3 : vector<4x256xf32>
    %cst = arith.constant dense<0.000000e+00> : vector<4xf32>
    %5 = vector.multi_reduction <add>, %4, %cst [1] : vector<4x256xf32> to vector<4xf32>
    %6 = vector.shape_cast %5 : vector<4xf32> to vector<4x1xf32>
    %c0_2 = arith.constant 0 : index
    %c0_3 = arith.constant 0 : index
    %c0_4 = arith.constant 0 : index
    %c0_5 = arith.constant 0 : index
    %7 = vector.load %arg3[%c0_2, %c0_3, %c0_4, %c0_5] : memref<1x1x4x5xf32, #tpu.memory_space<vmem>>, vector<1x1x4x1xf32>
    %8 = vector.shape_cast %7 : vector<1x1x4x1xf32> to vector<4x1xf32>
    %9 = vector.shape_cast %6 : vector<4x1xf32> to vector<1x1x4x1xf32>
    tpu.vector_store %arg3[%c0_2, %c0_3, %c0_4, %c0_5], %9 {strides = array<i32>} : memref<1x1x4x5xf32, #tpu.memory_space<vmem>>, vector<1x1x4x1xf32>,
    %10 = vector.extract_strided_slice %1 {offsets = [1, 0], sizes = [1, 256], strides = [1, 1]} : vector<4x256xf32> to vector<1x256xf32>
    %11 = vector.broadcast %10 : vector<1x256xf32> to vector<4x256xf32>
    %12 = arith.mulf %1, %11 : vector<4x256xf32>
    %cst_6 = arith.constant dense<0.000000e+00> : vector<4xf32>
    %13 = vector.multi_reduction <add>, %12, %cst_6 [1] : vector<4x256xf32> to vector<4xf32>
    %14 = vector.shape_cast %13 : vector<4xf32> to vector<4x1xf32>
    %c0_7 = arith.constant 0 : index
    %c0_8 = arith.constant 0 : index
    %c0_9 = arith.constant 0 : index
    %c1 = arith.constant 1 : index
    %15 = vector.load %arg3[%c0_7, %c0_8, %c0_9, %c1] : memref<1x1x4x5xf32, #tpu.memory_space<vmem>>, vector<1x1x4x1xf32>
    %16 = vector.shape_cast %15 : vector<1x1x4x1xf32> to vector<4x1xf32>
    %17 = vector.shape_cast %14 : vector<4x1xf32> to vector<1x1x4x1xf32>
    tpu.vector_store %arg3[%c0_7, %c0_8, %c0_9, %c1], %17 {strides = array<i32>} : memref<1x1x4x5xf32, #tpu.memory_space<vmem>>, vector<1x1x4x1xf32>,
    %18 = vector.extract_strided_slice %1 {offsets = [2, 0], sizes = [1, 256], strides = [1, 1]} : vector<4x256xf32> to vector<1x256xf32>
    %19 = vector.broadcast %18 : vector<1x256xf32> to vector<4x256xf32>
    %20 = arith.mulf %1, %19 : vector<4x256xf32>
    %cst_10 = arith.constant dense<0.000000e+00> : vector<4xf32>
    %21 = vector.multi_reduction <add>, %20, %cst_10 [1] : vector<4x256xf32> to vector<4xf32>
    %22 = vector.shape_cast %21 : vector<4xf32> to vector<4x1xf32>
    %c0_11 = arith.constant 0 : index
    %c0_12 = arith.constant 0 : index
    %c0_13 = arith.constant 0 : index
    %c2 = arith.constant 2 : index
    %23 = vector.load %arg3[%c0_11, %c0_12, %c0_13, %c2] : memref<1x1x4x5xf32, #tpu.memory_space<vmem>>, vector<1x1x4x1xf32>
    %24 = vector.shape_cast %23 : vector<1x1x4x1xf32> to vector<4x1xf32>
    %25 = vector.shape_cast %22 : vector<4x1xf32> to vector<1x1x4x1xf32>
    tpu.vector_store %arg3[%c0_11, %c0_12, %c0_13, %c2], %25 {strides = array<i32>} : memref<1x1x4x5xf32, #tpu.memory_space<vmem>>, vector<1x1x4x1xf32>,
    %26 = vector.extract_strided_slice %1 {offsets = [3, 0], sizes = [1, 256], strides = [1, 1]} : vector<4x256xf32> to vector<1x256xf32>
    %27 = vector.broadcast %26 : vector<1x256xf32> to vector<4x256xf32>
    %28 = arith.mulf %1, %27 : vector<4x256xf32>
    %cst_14 = arith.constant dense<0.000000e+00> : vector<4xf32>
    %29 = vector.multi_reduction <add>, %28, %cst_14 [1] : vector<4x256xf32> to vector<4xf32>
    %30 = vector.shape_cast %29 : vector<4xf32> to vector<4x1xf32>
    %c0_15 = arith.constant 0 : index
    %c0_16 = arith.constant 0 : index
    %c0_17 = arith.constant 0 : index
    %c3 = arith.constant 3 : index
    %31 = vector.load %arg3[%c0_15, %c0_16, %c0_17, %c3] : memref<1x1x4x5xf32, #tpu.memory_space<vmem>>, vector<1x1x4x1xf32>
    %32 = vector.shape_cast %31 : vector<1x1x4x1xf32> to vector<4x1xf32>
    %33 = vector.shape_cast %30 : vector<4x1xf32> to vector<1x1x4x1xf32>
    tpu.vector_store %arg3[%c0_15, %c0_16, %c0_17, %c3], %33 {strides = array<i32>} : memref<1x1x4x5xf32, #tpu.memory_space<vmem>>, vector<1x1x4x1xf32>,
    %cst_18 = arith.constant dense<0.000000e+00> : vector<4xf32>
    %34 = vector.multi_reduction <add>, %1, %cst_18 [1] : vector<4x256xf32> to vector<4xf32>
    %35 = vector.shape_cast %34 : vector<4xf32> to vector<4x1xf32>
    %c0_19 = arith.constant 0 : index
    %c0_20 = arith.constant 0 : index
    %c0_21 = arith.constant 0 : index
    %c4 = arith.constant 4 : index
    %36 = vector.load %arg3[%c0_19, %c0_20, %c0_21, %c4] : memref<1x1x4x5xf32, #tpu.memory_space<vmem>>, vector<1x1x4x1xf32>
    %37 = vector.shape_cast %36 : vector<1x1x4x1xf32> to vector<4x1xf32>
    %38 = vector.shape_cast %35 : vector<4x1xf32> to vector<1x1x4x1xf32>
    tpu.vector_store %arg3[%c0_19, %c0_20, %c0_21, %c4], %38 {strides = array<i32>} : memref<1x1x4x5xf32, #tpu.memory_space<vmem>>, vector<1x1x4x1xf32>,
    return
  }
  func.func @transform_0(%arg0: i32, %arg1: i32) -> (i32, i32, i32) {
    %c0_i32 = arith.constant 0 : i32
    %c0_i32_0 = arith.constant 0 : i32
    return %arg0, %c0_i32, %arg1 : i32, i32, i32
  }
  func.func @transform_1(%arg0: i32, %arg1: i32) -> (i32, i32, i32, i32) {
    %c0_i32 = arith.constant 0 : i32
    %c0_i32_0 = arith.constant 0 : i32
    %c0_i32_1 = arith.constant 0 : i32
    return %arg0, %arg1, %c0_i32, %c0_i32_0 : i32, i32, i32, i32
  }
}

</mosaic_0001>

<llo_original>
// kernel: tpu_custom_call.1
$region0: #{tpu_custom_call.1}
  #allocation0 [shape = 'u32[]', space=smem, size = 0x4, offset = 0x4, fixed_abs, tag = 'smem constant byte address 0x4 - core index']
  #allocation1 [shape = 'u32[144,128]{1,0:T(1,128)}', space=vmem, size = 0x12000, scoped, tag = 'internal scratch']
  %s0 = inlined_call_operand.hbm [shape: f32[2,4,256], index: 0, kind: input, shape index: {}]
  %s1 = inlined_call_operand.hbm [shape: f32[2,1,4,5], index: 1, kind: output, shape index: {}]
  %s2 = sld [smem:[#allocation0]]
  $region41: #{tpu_custom_call.1} parent=0
    _
  %s4 = ssub.s32 1, %s2
  %s5 = scalar_select 0, %s4, %s2
  $region1: #{tpu_custom_call.1} parent=0
    #allocation2 [shape = 'u8[8192]{0}', space=vmem, size = 0x2000, scoped, tag = 'input window, operand 0']
    #allocation3 [shape = 's32[2]{0}', space=sflag, size = 0x8, scoped, tag = 'scoped memory for tpu_custom_call.1']
    #allocation4 [shape = 's32[2]{0}', space=sflag, size = 0x8, scoped, tag = 'scoped memory for tpu_custom_call.1']
    #allocation5 [shape = 'u8[4096]{0}', space=vmem, size = 0x1000, scoped, tag = 'output window, operand 0']
    %6 = vsyncpa [#allocation3], 0
    %s7 = scalar_lea.sflag [#allocation3], 1
    %8 = vsyncpa %s7, 0
    %9 = vsyncpa [#allocation4], 0
    %s10 = scalar_lea.sflag [#allocation4], 1
    %11 = vsyncpa %s10, 0
    loop: start=0, step=1, limit=4
    $region2: #{tpu_custom_call.1} parent=1 // loop_pre_header
      _
    $region3: #{tpu_custom_call.1} parent=1 // loop_header
      %s13 = sphi 0, %s17
      %p14 = scmp.ge.s32.totalorder %s13, 4
      %s20 = sphi 0, %s32
      %s21 = sphi 0, %s28
      %s22 = sphi 0, %s20
      %s23 = sphi 0, %s21
      %s24 = sphi 0, %s22
      %s25 = sphi 0, %s23
      %s37 = sphi 0, %s39
      %s40 = sphi 0, %s37
      %s41 = sphi 0, %s40
      %s57 = sphi 0, %s41
      %s65 = sphi 0, %s67
      %s68 = sphi 0, %s65
      %s69 = sphi 0, %s68
      %s85 = sphi 0, %s69
    $region4: #{tpu_custom_call.1} parent=1 // loop_header_branch
      %16 = sbr.rel (%p14) target = $region8
    $region5: #{tpu_custom_call.1} parent=1 // loop_body
      %s18 = ssub.s32 %s13, 1
      %s19 = ssub.s32 %s13, 2
      %s26 = sadd.s32 1, %s21
      %p27 = scmp.ge.s32.totalorder %s26, 1
      %s28 = scalar_select %p27, 0, %s26
      %s29 = sadd.s32 1, %s20
      %s30 = scalar_select %p27, %s29, %s20
      %p31 = scmp.ge.s32.totalorder %s30, 2
      %s32 = scalar_select %p31, 0, %s30
      %s33 = ssub.s32 %s20, %s32
      %s34 = ssub.s32 %s21, %s28
      %s35 = sor.u32 %s33, %s34
      %p36 = scmp.eq.s32.totalorder %s35, 0
      %s38 = sadd.s32 %s37, 1
      %s39 = scalar_select %p36, %s37, %s38
      %p42 = pneg %p36
      %p43 = scmp.eq.s32.totalorder %s13, 1
      %p44 = por %p42, %p43
      %p45 = scmp.ne.s32.totalorder %s37, %s40
      %p46 = scmp.eq.s32.totalorder %s13, 0
      %p47 = por %p45, %p46
      %p48 = scmp.ne.s32.totalorder %s37, %s40
      %p49 = scmp.eq.s32.totalorder %s18, 1
      %p50 = por %p48, %p49
      %p51 = scmp.ne.s32.totalorder %s40, %s41
      %p52 = scmp.eq.s32.totalorder %s18, 0
      %p53 = por %p51, %p52
      %p54 = scmp.ne.s32.totalorder %s40, %s41
      %p55 = scmp.eq.s32.totalorder %s19, 1
      %p56 = por %p54, %p55
      %p58 = scmp.ne.s32.totalorder %s41, %s57
      %p59 = scmp.eq.s32.totalorder %s19, 0
      %p60 = por %p58, %p59
      %s61 = ssub.s32 %s20, %s32
      %s62 = ssub.s32 %s21, %s28
      %s63 = sor.u32 %s61, %s62
      %p64 = scmp.eq.s32.totalorder %s63, 0
      %s66 = sadd.s32 %s65, 1
      %s67 = scalar_select %p64, %s65, %s66
      %p70 = pneg %p64
      %p71 = scmp.eq.s32.totalorder %s13, 1
      %p72 = por %p70, %p71
      %p73 = scmp.ne.s32.totalorder %s65, %s68
      %p74 = scmp.eq.s32.totalorder %s13, 0
      %p75 = por %p73, %p74
      %p76 = scmp.ne.s32.totalorder %s65, %s68
      %p77 = scmp.eq.s32.totalorder %s18, 1
      %p78 = por %p76, %p77
      %p79 = scmp.ne.s32.totalorder %s68, %s69
      %p80 = scmp.eq.s32.totalorder %s18, 0
      %p81 = por %p79, %p80
      %p82 = scmp.ne.s32.totalorder %s68, %s69
      %p83 = scmp.eq.s32.totalorder %s19, 1
      %p84 = por %p82, %p83
      %p86 = scmp.ne.s32.totalorder %s69, %s85
      %p87 = scmp.eq.s32.totalorder %s19, 0
      %p88 = por %p86, %p87
      %p89 = scmp.le.s32.totalorder 1, %s13
      %p90 = scmp.lt.s32.totalorder %s13, 3
      %p91 = pnand %p89, %p90
      %p92 = pneg %p91
      // Predicated region
      $region9: #{tpu_custom_call.1} parent=5 // pred_check
        _
      $region10: #{tpu_custom_call.1} parent=5 // pred_check_branch
        %94 = sbr.rel (%p91) target = $region12
      $region11: #{tpu_custom_call.1} parent=5 // pred_region
        %s95 = ssub.s32 %s13, 1
      $region12: #{tpu_custom_call.1} parent=5 // pred_fallthru
        _
      %p96 = scmp.lt.s32.totalorder %s13, 2
      // Predicated region
      $region13: #{tpu_custom_call.1} parent=5 // pred_check
        %p97 = pneg %p96
      $region14: #{tpu_custom_call.1} parent=5 // pred_check_branch
        %99 = sbr.rel (%p97) target = $region16
      $region15: #{tpu_custom_call.1} parent=5 // pred_region
        // Predicated region
        $region17: #{tpu_custom_call.1} parent=15 // pred_check
          %p100 = pneg %p47
        $region18: #{tpu_custom_call.1} parent=15 // pred_check_branch
          %102 = sbr.rel (%p100) target = $region20
        $region19: #{tpu_custom_call.1} parent=15 // pred_region
          %s103 = sand.u32 %s37, 1
          %s104 = scalar_lea.sflag [#allocation3], %s103
          %s105 = sand.u32 %s37, 1
          %s106 = smul.addr %s105, 8
          %s107 = scalar_lea.vmem [#allocation2], %s106
          %s108 = smul.u32 2, %s21
          %s110 = ssub.s32 128, 128
          %111 = vsyncadd %s104, %s110
          %s112 = smul.addr %s20, 2
          %s113 = sadd.s32 %s108, %s112
          %s114 = smul.addr %s113, 64
          %s115 = scalar_lea.hbm %s0, %s114
          %s117 = sshll.u32 %s107, 4
          %s118 = int_to_ptr.vmem [resolvable:$true] %s117
          %120 = dma.hbm_to_vmem [thread:$0]  %s115, 128, %s118, %s104
        $region20: #{tpu_custom_call.1} parent=15 // pred_fallthru
          _
      $region16: #{tpu_custom_call.1} parent=5 // pred_fallthru
        _
      %p121 = scmp.le.s32.totalorder 1, %s13
      %p122 = scmp.lt.s32.totalorder %s13, 3
      %p123 = pnand %p121, %p122
      %p124 = pneg %p123
      // Predicated region
      $region21: #{tpu_custom_call.1} parent=5 // pred_check
        _
      $region22: #{tpu_custom_call.1} parent=5 // pred_check_branch
        %126 = sbr.rel (%p123) target = $region24
      $region23: #{tpu_custom_call.1} parent=5 // pred_region
        %s127 = ssub.s32 %s13, 1
        %s128 = sand.u32 %s40, 1
        %s129 = scalar_lea.sflag [#allocation3], %s128
        %s130 = sand.u32 %s40, 1
        %s131 = smul.addr %s130, 8
        %s132 = scalar_lea.vmem [#allocation2], %s131
        // Predicated region
        $region25: #{tpu_custom_call.1} parent=23 // pred_check
          %p133 = pneg %p53
        $region26: #{tpu_custom_call.1} parent=23 // pred_check_branch
          %135 = sbr.rel (%p133) target = $region28
        $region27: #{tpu_custom_call.1} parent=23 // pred_region
          %136 = dma.done %s129, 128
        $region28: #{tpu_custom_call.1} parent=23 // pred_fallthru
          _
        %s137 = sand.u32 %s40, 1
        %s138 = scalar_lea.sflag [#allocation3], %s137
        %s139 = sand.u32 %s40, 1
        %s140 = smul.addr %s139, 8
        %s141 = scalar_lea.vmem [#allocation2], %s140
        %p142 = pneg %p53
        %p143 = pneg %p50
        %p144 = pneg %p81
        %p145 = pneg %p78
        %s146 = sand.u32 %s68, 1
        %s147 = scalar_lea.sflag [#allocation4], %s146
        %s148 = sand.u32 %s68, 1
        %s149 = smul.addr %s148, 4
        %s150 = scalar_lea.vmem [#allocation5], %s149
        %s151 = smul.u32 2, %s23
        %v152 = vld [vmem:[%s132] sm:$0xff]
        %v154 = vlaneseq
        %v155 = vshrl.u32 %v154, 7
        %v156 = vsub.s32 0, %v155
        %v157 = vrot.slane %v152, %v156
        %v158 = vlaneseq
        %v159 = vshrl.u32 %v158, 7
        %v160 = vsub.s32 4, %v159
        %v161 = vrot.slane %v152, %v160
        %v164 = vlaneseq
        %v165 = vshrl.u32 %v164, 7
        %v166 = vsub.s32 0, %v165
        %v167 = vrot.slane %v157, %v166
        %v168 = vlaneseq
        %v169 = vshrl.u32 %v168, 7
        %v170 = vsub.s32 0, %v169
        %v171 = vrot.slane %v161, %v170
        %v174 = vcombine.low %v167, %v171
        %v176 = vmul.f32 %v152, %v174
        %v178 = vcombine.high %v176, %v176
        %vm180 = vcmask 1043456
        %v181 = vsel %vm180, %v176, 0.0
        %v182 = vsel %vm180, %v178, 0.0
        %v183 = vadd.f32 %v181, %v182
        %184 = vadd.xlane.f32.xlu0 %v183
        %v185 = vpop.xlane.xlu0 %184
        %vm186 = vcmask 3072
        %187 = vst.msk [vmem:[%s150] sm:$0xf] %vm186, %v185
        %v188 = vlaneseq
        %v189 = vshrl.u32 %v188, 7
        %v190 = vsub.s32 1, %v189
        %v191 = vrot.slane %v152, %v190
        %v192 = vlaneseq
        %v193 = vshrl.u32 %v192, 7
        %v194 = vsub.s32 5, %v193
        %v195 = vrot.slane %v152, %v194
        %v198 = vlaneseq
        %v199 = vshrl.u32 %v198, 7
        %v200 = vsub.s32 1, %v199
        %v201 = vrot.slane %v191, %v200
        %v202 = vlaneseq
        %v203 = vshrl.u32 %v202, 7
        %v204 = vsub.s32 1, %v203
        %v205 = vrot.slane %v195, %v204
        %v208 = vcombine.low %v201, %v205
        %v210 = vmul.f32 %v152, %v208
        %v212 = vcombine.high %v210, %v210
        %v214 = vsel %vm180, %v210, 0.0
        %v215 = vsel %vm180, %v212, 0.0
        %v216 = vadd.f32 %v214, %v215
        %217 = vadd.xlane.f32.xlu0 %v216
        %v218 = vpop.xlane.xlu0 %217
        %vm219 = vcmask 11272
        %220 = vst.msk [vmem:[%s150] sm:$0xf] %vm219, %v218
        %v221 = vlaneseq
        %v222 = vshrl.u32 %v221, 7
        %v223 = vsub.s32 2, %v222
        %v224 = vrot.slane %v152, %v223
        %v225 = vlaneseq
        %v226 = vshrl.u32 %v225, 7
        %v227 = vsub.s32 6, %v226
        %v228 = vrot.slane %v152, %v227
        %v231 = vlaneseq
        %v232 = vshrl.u32 %v231, 7
        %v233 = vsub.s32 2, %v232
        %v234 = vrot.slane %v224, %v233
        %v235 = vlaneseq
        %v236 = vshrl.u32 %v235, 7
        %v237 = vsub.s32 2, %v236
        %v238 = vrot.slane %v228, %v237
        %v241 = vcombine.low %v234, %v238
        %v243 = vmul.f32 %v152, %v241
        %v245 = vcombine.high %v243, %v243
        %v247 = vsel %vm180, %v243, 0.0
        %v248 = vsel %vm180, %v245, 0.0
        %v249 = vadd.f32 %v247, %v248
        %250 = vadd.xlane.f32.xlu0 %v249
        %v251 = vpop.xlane.xlu0 %250
        %vm252 = vcmask 19472
        %253 = vst.msk [vmem:[%s150] sm:$0xf] %vm252, %v251
        %v254 = vlaneseq
        %v255 = vshrl.u32 %v254, 7
        %v256 = vsub.s32 3, %v255
        %v257 = vrot.slane %v152, %v256
        %v258 = vlaneseq
        %v259 = vshrl.u32 %v258, 7
        %v260 = vsub.s32 7, %v259
        %v261 = vrot.slane %v152, %v260
        %v264 = vlaneseq
        %v265 = vshrl.u32 %v264, 7
        %v266 = vsub.s32 3, %v265
        %v267 = vrot.slane %v257, %v266
        %v268 = vlaneseq
        %v269 = vshrl.u32 %v268, 7
        %v270 = vsub.s32 3, %v269
        %v271 = vrot.slane %v261, %v270
        %v274 = vcombine.low %v267, %v271
        %v276 = vmul.f32 %v152, %v274
        %v278 = vcombine.high %v276, %v276
        %v280 = vsel %vm180, %v276, 0.0
        %v281 = vsel %vm180, %v278, 0.0
        %v282 = vadd.f32 %v280, %v281
        %283 = vadd.xlane.f32.xlu0 %v282
        %v284 = vpop.xlane.xlu0 %283
        %vm285 = vcmask 27672
        %286 = vst.msk [vmem:[%s150] sm:$0xf] %vm285, %v284
        %v287 = vcombine.high %v152, %v152
        %v289 = vsel %vm180, %v152, 0.0
        %v290 = vsel %vm180, %v287, 0.0
        %v291 = vadd.f32 %v289, %v290
        %292 = vadd.xlane.f32.xlu0 %v291
        %v293 = vpop.xlane.xlu0 %292
        %vm294 = vcmask 35872
        %295 = vst.msk [vmem:[%s150] sm:$0xf] %vm294, %v293
        %s296 = sand.u32 %s68, 1
        %s297 = scalar_lea.sflag [#allocation4], %s296
        %s298 = sand.u32 %s68, 1
        %s299 = smul.addr %s298, 4
        %s300 = scalar_lea.vmem [#allocation5], %s299
        // Predicated region
        $region29: #{tpu_custom_call.1} parent=23 // pred_check
          %p301 = pneg %p78
        $region30: #{tpu_custom_call.1} parent=23 // pred_check_branch
          %303 = sbr.rel (%p301) target = $region32
        $region31: #{tpu_custom_call.1} parent=23 // pred_region
          %s305 = ssub.s32 64, 64
          %306 = vsyncadd %s297, %s305
          %s307 = sadd.s32 %s23, %s22
          %s308 = smul.addr %s307, 64
          %s309 = scalar_lea.hbm %s1, %s308
          %s311 = sshll.u32 %s300, 4
          %s312 = int_to_ptr.vmem [resolvable:$true] %s311
          %314 = dma.vmem_to_hbm [thread:$0]  %s312, 64, %s309, %s297
        $region32: #{tpu_custom_call.1} parent=23 // pred_fallthru
          _
      $region24: #{tpu_custom_call.1} parent=5 // pred_fallthru
        _
      %p315 = scmp.le.s32.totalorder 2, %s13
      // Predicated region
      $region33: #{tpu_custom_call.1} parent=5 // pred_check
        %p316 = pneg %p315
      $region34: #{tpu_custom_call.1} parent=5 // pred_check_branch
        %318 = sbr.rel (%p316) target = $region36
      $region35: #{tpu_custom_call.1} parent=5 // pred_region
        %s319 = ssub.s32 %s13, 2
        // Predicated region
        $region37: #{tpu_custom_call.1} parent=35 // pred_check
          %p320 = pneg %p84
        $region38: #{tpu_custom_call.1} parent=35 // pred_check_branch
          %322 = sbr.rel (%p320) target = $region40
        $region39: #{tpu_custom_call.1} parent=35 // pred_region
          %s323 = sand.u32 %s69, 1
          %s324 = scalar_lea.sflag [#allocation4], %s323
          %s325 = sand.u32 %s69, 1
          %s326 = smul.addr %s325, 4
          %s327 = scalar_lea.vmem [#allocation5], %s326
          %328 = dma.done %s324, 64
        $region40: #{tpu_custom_call.1} parent=35 // pred_fallthru
          _
      $region36: #{tpu_custom_call.1} parent=5 // pred_fallthru
        _
    $region6: #{tpu_custom_call.1} parent=1 // loop_footer
      %s17 = sadd.s32 1, %s13
    $region7: #{tpu_custom_call.1} parent=1 // loop_footer_branch
      %12 = sbr.rel target = $region3
    $region8: #{tpu_custom_call.1} parent=1 // loop_exit
      _
    %329 = vsyncpa [#allocation3], 1
    %s330 = scalar_lea.sflag [#allocation3], 1
    %331 = vsyncpa %s330, 1
    %332 = vsyncpa [#allocation4], 1
    %s333 = scalar_lea.sflag [#allocation4], 1
    %334 = vsyncpa %s333, 1

</llo_original>
